<compile_context>
chip_gen: v7x
topology: tpu7x:2x2x1
jax: 0.10.0
libtpu: 0.0.40
codegen_flags: <defaults>
</compile_context>

<pallas_src>
import functools
import math

import jax
import jax.numpy as jnp
from jax.experimental import pallas as pl
from jax.experimental.pallas import tpu as pltpu

_VMEM_LIMIT = 64 * 1024 * 1024


# ----------------------------------------------------------------------------
# helpers
# ----------------------------------------------------------------------------
def _round_up(x, m):
    return (x + m - 1) // m * m


def _tile(dim, pref, align):
    """Full extent if dim <= pref, else the largest multiple-of-`align`
    divisor of dim that is <= pref.  Callers pad dims that need tiling to a
    256 multiple so an aligned divisor always exists."""
    if dim <= pref:
        return dim
    t = (pref // align) * align
    while t >= align:
        if dim % t == 0:
            return t
        t -= align
    return dim  # only reachable for un-padded odd dims (not used in this script)


def _gelu(x):
    # TODO(synk): PyTorch F.gelu default is exact (erf) GELU; tanh approximation
    # is used here for Mosaic-safe lowering (max abs diff ~1e-3).
    c = math.sqrt(2.0 / math.pi)
    return 0.5 * x * (1.0 + jnp.tanh(c * (x + 0.044715 * x * x * x)))


# ----------------------------------------------------------------------------
# Tiled matmul (+bias): y = x @ w (+ b)
# ----------------------------------------------------------------------------
def _matmul_bias_kernel(x_ref, w_ref, b_ref, o_ref, acc_ref):
    @pl.when(pl.program_id(2) == 0)
    def _():
        acc_ref[...] = jnp.zeros_like(acc_ref)

    acc_ref[...] += jnp.dot(x_ref[...], w_ref[...],
                            preferred_element_type=jnp.float32)

    @pl.when(pl.program_id(2) == pl.num_programs(2) - 1)
    def _():
        o_ref[...] = (acc_ref[...] + b_ref[...].astype(jnp.float32)
                      ).astype(o_ref.dtype)


def _matmul_nobias_kernel(x_ref, w_ref, o_ref, acc_ref):
    @pl.when(pl.program_id(2) == 0)
    def _():
        acc_ref[...] = jnp.zeros_like(acc_ref)

    acc_ref[...] += jnp.dot(x_ref[...], w_ref[...],
                            preferred_element_type=jnp.float32)

    @pl.when(pl.program_id(2) == pl.num_programs(2) - 1)
    def _():
        o_ref[...] = acc_ref[...].astype(o_ref.dtype)


def matmul_bias(x, w, b=None, *, out_dtype=jnp.bfloat16, tm=512, tn=512, tk=512):
    """x:[M,K] bf16, w:[K,N] bf16 (already [in,out]), b:[N] f32 or None.

    Dims that need tiling (dim > tile pref) are zero-padded to a 256 multiple
    so the tile is always an aligned divisor (never a full-dim VMEM blowup);
    the padding is sliced off the output."""
    M, K = x.shape
    Kw, N = w.shape
    assert K == Kw

    pm = (-M) % 256 if M > tm else 0
    pk = (-K) % 256 if K > tk else 0
    pn = (-N) % 256 if N > tn else 0
    if pm or pk:
        x = jnp.pad(x, ((0, pm), (0, pk)))
    if pk or pn:
        w = jnp.pad(w, ((0, pk), (0, pn)))
    if b is not None and pn:
        b = jnp.pad(b, (0, pn))
    Mp, Kp = x.shape
    Np = w.shape[1]

    tm_, tn_, tk_ = _tile(Mp, tm, 8), _tile(Np, tn, 128), _tile(Kp, tk, 128)
    grid = (Mp // tm_, Np // tn_, Kp // tk_)

    x_spec = pl.BlockSpec((tm_, tk_), lambda i, j, k: (i, k))
    w_spec = pl.BlockSpec((tk_, tn_), lambda i, j, k: (k, j))
    o_spec = pl.BlockSpec((tm_, tn_), lambda i, j, k: (i, j))
    scratch = [pltpu.VMEM((tm_, tn_), jnp.float32)]
    cp = pltpu.CompilerParams(
        dimension_semantics=("parallel", "parallel", "arbitrary"),
        vmem_limit_bytes=_VMEM_LIMIT)

    if b is None:
        out = pl.pallas_call(
            _matmul_nobias_kernel,
            out_shape=jax.ShapeDtypeStruct((Mp, Np), out_dtype),
            grid=grid,
            in_specs=[x_spec, w_spec],
            out_specs=o_spec,
            scratch_shapes=scratch,
            compiler_params=cp,
        )(x, w)
    else:
        b_spec = pl.BlockSpec((1, tn_), lambda i, j, k: (0, j))
        out = pl.pallas_call(
            _matmul_bias_kernel,
            out_shape=jax.ShapeDtypeStruct((Mp, Np), out_dtype),
            grid=grid,
            in_specs=[x_spec, w_spec, b_spec],
            out_specs=o_spec,
            scratch_shapes=scratch,
            compiler_params=cp,
        )(x, w, b.reshape(1, Np))

    if pm or pn:
        out = out[:M, :N]
    return out


# ----------------------------------------------------------------------------
# Fused matmul + bias + residual + LayerNorm  (used for the wo projection):
#   out = LayerNorm(x @ w + b + resid)
# N = D is kept as a full output block so LN stats see the whole row.
# ----------------------------------------------------------------------------
def _matmul_res_ln_kernel(x_ref, w_ref, b_ref, r_ref, g_ref, bln_ref,
                          o_ref, acc_ref, *, eps):
    k = pl.program_id(1)

    @pl.when(k == 0)
    def _():
        acc_ref[...] = jnp.zeros_like(acc_ref)

    acc_ref[...] += jnp.dot(x_ref[...], w_ref[...],
                            preferred_element_type=jnp.float32)

    @pl.when(k == pl.num_programs(1) - 1)
    def _():
        z = (acc_ref[...] + b_ref[...].astype(jnp.float32)
             + r_ref[...].astype(jnp.float32))
        mean = jnp.mean(z, axis=-1, keepdims=True)
        var = jnp.mean(jnp.square(z - mean), axis=-1, keepdims=True)
        o_ref[...] = ((z - mean) * jax.lax.rsqrt(var + eps)
                      * g_ref[...].astype(jnp.float32)
                      + bln_ref[...].astype(jnp.float32)).astype(o_ref.dtype)


def matmul_res_ln(x, w, b, resid, gamma, beta, eps, *, tm=256, tk=512):
    M, K = x.shape
    Kw, D = w.shape
    assert K == Kw and resid.shape == (M, D)
    tm_ = _tile(M, tm, 8)
    tk_ = _tile(K, tk, 128)
    grid = (M // tm_, K // tk_)
    return pl.pallas_call(
        functools.partial(_matmul_res_ln_kernel, eps=eps),
        out_shape=jax.ShapeDtypeStruct((M, D), jnp.bfloat16),
        grid=grid,
        in_specs=[
            pl.BlockSpec((tm_, tk_), lambda i, k: (i, k)),
            pl.BlockSpec((tk_, D), lambda i, k: (k, 0)),
            pl.BlockSpec((1, D), lambda i, k: (0, 0)),
            pl.BlockSpec((tm_, D), lambda i, k: (i, 0)),
            pl.BlockSpec((1, D), lambda i, k: (0, 0)),
            pl.BlockSpec((1, D), lambda i, k: (0, 0)),
        ],
        out_specs=pl.BlockSpec((tm_, D), lambda i, k: (i, 0)),
        scratch_shapes=[pltpu.VMEM((tm_, D), jnp.float32)],
        compiler_params=pltpu.CompilerParams(
            dimension_semantics=("parallel", "arbitrary"),
            vmem_limit_bytes=_VMEM_LIMIT),
    )(x, w, b.reshape(1, D), resid, gamma.reshape(1, D), beta.reshape(1, D))


# ----------------------------------------------------------------------------
# Fused FFN (+ residual + LayerNorm).  d_ff is streamed in tiles on an
# "arbitrary" grid axis: per step a [tm, tf] GELU chunk is contracted with the
# matching w2 tile into a [tm, D] f32 accumulator.  Neither the [tm, F]
# intermediate nor the whole w1/w2 weights are ever resident in VMEM.
# ----------------------------------------------------------------------------
def _ffn_res_ln_kernel(y_ref, w1_ref, b1_ref, w2_ref, b2_ref, g_ref, bln_ref,
                       o_ref, acc_ref, *, eps):
    fi = pl.program_id(1)

    @pl.when(fi == 0)
    def _():
        acc_ref[...] = jnp.zeros_like(acc_ref)

    y = y_ref[...]                                              # [tm, D] bf16
    h = jnp.dot(y, w1_ref[...], preferred_element_type=jnp.float32)
    h = _gelu(h + b1_ref[...].astype(jnp.float32))              # [tm, tf] f32
    acc_ref[...] += jnp.dot(h.astype(w2_ref.dtype), w2_ref[...],
                            preferred_element_type=jnp.float32)

    @pl.when(fi == pl.num_programs(1) - 1)
    def _():
        z = (acc_ref[...] + b2_ref[...].astype(jnp.float32)
             + y.astype(jnp.float32))                           # residual
        mean = jnp.mean(z, axis=-1, keepdims=True)
        var = jnp.mean(jnp.square(z - mean), axis=-1, keepdims=True)
        o_ref[...] = ((z - mean) * jax.lax.rsqrt(var + eps)
                      * g_ref[...].astype(jnp.float32)
                      + bln_ref[...].astype(jnp.float32)).astype(o_ref.dtype)


def ffn_res_ln(y, w1, b1, w2, b2, gamma, beta, eps, *, tm=256, tf=512):
    M, D = y.shape
    F = w1.shape[1]
    tm_ = _tile(M, tm, 8)
    tf_ = _tile(F, tf, 128)
    grid = (M // tm_, F // tf_)
    return pl.pallas_call(
        functools.partial(_ffn_res_ln_kernel, eps=eps),
        out_shape=jax.ShapeDtypeStruct((M, D), jnp.bfloat16),
        grid=grid,
        in_specs=[
            pl.BlockSpec((tm_, D), lambda i, f: (i, 0)),
            pl.BlockSpec((D, tf_), lambda i, f: (0, f)),
            pl.BlockSpec((1, tf_), lambda i, f: (0, f)),
            pl.BlockSpec((tf_, D), lambda i, f: (f, 0)),
            pl.BlockSpec((1, D), lambda i, f: (0, 0)),
            pl.BlockSpec((1, D), lambda i, f: (0, 0)),
            pl.BlockSpec((1, D), lambda i, f: (0, 0)),
        ],
        out_specs=pl.BlockSpec((tm_, D), lambda i, f: (i, 0)),
        scratch_shapes=[pltpu.VMEM((tm_, D), jnp.float32)],
        compiler_params=pltpu.CompilerParams(
            dimension_semantics=("parallel", "arbitrary"),
            vmem_limit_bytes=_VMEM_LIMIT),
    )(y, w1, b1.reshape(1, F), w2, b2.reshape(1, D),
      gamma.reshape(1, D), beta.reshape(1, D))


# ----------------------------------------------------------------------------
# Multi-head self-attention.
#   grid = (batch, head_group, q_tile), all "parallel".
#   qkv stays in the row-major [B*S, 3*H*dh] slab; when g*d_head is a multiple
#   of 128 the q/k/v blocks are 128-lane-aligned column blocks of the slab,
#   otherwise (tiny head dims) the full columns are DMA'd and sliced in-kernel.
#   The pad+causal mask is built in-kernel from [B,1,S] pad flags; probs are
#   materialized (module returns them) in [1, g, tq, S] blocks.
# ----------------------------------------------------------------------------
def _attention_kernel(q_ref, k_ref, v_ref, pad_ref, ctx_ref, probs_ref, *,
                      g, d_head, scale, q_off, k_off, v_off):
    S = k_ref.shape[0]
    tq = q_ref.shape[0]
    row0 = pl.program_id(2) * tq
    row = row0 + jax.lax.broadcasted_iota(jnp.int32, (tq, S), 0)
    col = jax.lax.broadcasted_iota(jnp.int32, (tq, S), 1)
    key_pad = pad_ref[0]                                   # [1, S] f32
    mask = jnp.logical_or(col > row, key_pad > 0.5)        # [tq, S] bool

    ctx_parts = []
    for i in range(g):
        q = q_ref[:, q_off + i * d_head: q_off + (i + 1) * d_head]
        k = k_ref[:, k_off + i * d_head: k_off + (i + 1) * d_head]
        v = v_ref[:, v_off + i * d_head: v_off + (i + 1) * d_head]

        # q . k contracting on d_head (no explicit k.T / XLU transpose)
        s = jax.lax.dot_general(q, k, (((1,), (1,)), ((), ())),
                                preferred_element_type=jnp.float32) * scale
        s = jnp.where(mask, jnp.float32(-1e9), s)           # masked_fill
        s = s - jnp.max(s, axis=-1, keepdims=True)          # stable softmax
        e = jnp.exp(s)
        p = e / jnp.sum(e, axis=-1, keepdims=True)

        probs_ref[0, i] = p
        ctx_parts.append(jnp.dot(p.astype(v.dtype), v,
                                 preferred_element_type=jnp.float32))

    ctx = ctx_parts[0] if g == 1 else jnp.concatenate(ctx_parts, axis=-1)
    ctx_ref[...] = ctx.astype(ctx_ref.dtype)                # lane-dense store


def attention(qkv, pad_flags, B, S, n_head, d_head, scale, *, tq=256):
    """qkv:[B*S, 3*H*dh] bf16, pad_flags:[B,1,S] f32 (1.0 = pad key)."""
    M, W = qkv.shape
    Hd = n_head * d_head
    assert W == 3 * Hd and M == B * S

    tq_ = _tile(S, tq, 8)
    QT = S // tq_

    # heads per group: smallest group whose lane width is a 128 multiple
    g = next((c for c in range(1, n_head + 1)
              if n_head % c == 0 and (c * d_head) % 128 == 0), None)
    grouped = g is not None
    if not grouped:
        g = n_head
    HG = n_head // g
    Gd = g * d_head

    if grouped:
        # 128-lane-aligned column blocks of the qkv slab
        q_spec = pl.BlockSpec((tq_, Gd), lambda b, hg, qt: (b * QT + qt, hg))
        k_spec = pl.BlockSpec((S, Gd), lambda b, hg, qt: (b, HG + hg))
        v_spec = pl.BlockSpec((S, Gd), lambda b, hg, qt: (b, 2 * HG + hg))
        ctx_spec = pl.BlockSpec((tq_, Gd), lambda b, hg, qt: (b * QT + qt, hg))
        offs = (0, 0, 0)
    else:
        # tiny head dims: full columns, slice q/k/v sections in-kernel
        q_spec = pl.BlockSpec((tq_, 3 * Hd), lambda b, hg, qt: (b * QT + qt, 0))
        k_spec = pl.BlockSpec((S, 3 * Hd), lambda b, hg, qt: (b, 0))
        v_spec = k_spec
        ctx_spec = pl.BlockSpec((tq_, Hd), lambda b, hg, qt: (b * QT + qt, 0))
        offs = (0, Hd, 2 * Hd)

    ctx, probs = pl.pallas_call(
        functools.partial(_attention_kernel, g=g, d_head=d_head, scale=scale,
                          q_off=offs[0], k_off=offs[1], v_off=offs[2]),
        out_shape=(
            jax.ShapeDtypeStruct((M, Hd), jnp.bfloat16),
            jax.ShapeDtypeStruct((B, n_head, S, S), jnp.float32),
        ),
        grid=(B, HG, QT),
        in_specs=[q_spec, k_spec, v_spec,
                  pl.BlockSpec((1, 1, S), lambda b, hg, qt: (b, 0, 0))],
        out_specs=(
            ctx_spec,
            pl.BlockSpec((1, g, tq_, S), lambda b, hg, qt: (b, hg, qt, 0)),
        ),
        compiler_params=pltpu.CompilerParams(
            dimension_semantics=("parallel", "parallel", "parallel"),
            vmem_limit_bytes=_VMEM_LIMIT),
    )(qkv, qkv, qkv, pad_flags)
    return ctx, probs


# ----------------------------------------------------------------------------
# Parameter init (deterministic, synthetic) and forward glue
# ----------------------------------------------------------------------------
def init_params(key, cfg):
    V, D = cfg["n_dec_vocab"], cfg["d_hidn"]
    H, dh, F, L = cfg["n_head"], cfg["d_head"], cfg["d_ff"], cfg["n_layer"]
    Hd = H * dh
    keys = jax.random.split(key, 2 + L)

    def normal(k, shape):
        return jax.random.normal(k, shape, jnp.float32) * 0.02

    dec_emb = normal(keys[0], (V, D))
    # tied LM-head weight, pre-transposed to [D, V] once and lane-padded to a
    # 128 multiple ONCE at init (padded logits columns are sliced off later).
    emb_t = dec_emb.T
    Vp = _round_up(V, 128)
    if Vp != V:
        emb_t = jnp.pad(emb_t, ((0, 0), (0, Vp - V)))

    params = {
        "dec_emb": dec_emb.astype(jnp.bfloat16),
        "dec_emb_t": emb_t.astype(jnp.bfloat16),              # [D, Vp]
        "pos_emb": normal(keys[1], (cfg["n_dec_seq"] + 1, D)).astype(jnp.bfloat16),
        "layers": [],
    }
    for li in range(L):
        lk = jax.random.split(keys[2 + li], 6)
        wq, wk, wv = (normal(lk[0], (D, Hd)), normal(lk[1], (D, Hd)),
                      normal(lk[2], (D, Hd)))
        params["layers"].append({
            # weights pre-transposed ([in, out]) and stored bf16 for the MXU
            "wqkv_t": jnp.concatenate([wq, wk, wv], axis=1).astype(jnp.bfloat16),
            "bqkv": jnp.zeros((3 * Hd,), jnp.float32),
            "wo_t": normal(lk[3], (Hd, D)).astype(jnp.bfloat16),
            "bo": jnp.zeros((D,), jnp.float32),
            "ln1_g": jnp.ones((D,), jnp.float32), "ln1_b": jnp.zeros((D,), jnp.float32),
            "w1_t": normal(lk[4], (D, F)).astype(jnp.bfloat16),
            "b1": jnp.zeros((F,), jnp.float32),
            "w2_t": normal(lk[5], (F, D)).astype(jnp.bfloat16),
            "b2": jnp.zeros((D,), jnp.float32),
            "ln3_g": jnp.ones((D,), jnp.float32), "ln3_b": jnp.zeros((D,), jnp.float32),
        })
    return params


def gpt_pretrain_forward(params, dec_inputs, cfg):
    B, S = dec_inputs.shape
    D, H, dh = cfg["d_hidn"], cfg["n_head"], cfg["d_head"]
    V, i_pad, eps = cfg["n_dec_vocab"], cfg["i_pad"], cfg["layer_norm_epsilon"]

    # --- embeddings (gather is glue) ---
    positions = jnp.broadcast_to(jnp.arange(1, S + 1, dtype=jnp.int32), (B, S))
    positions = jnp.where(dec_inputs == i_pad, 0, positions)
    x = params["dec_emb"][dec_inputs] + params["pos_emb"][positions]   # [B,S,D] bf16
    x2 = x.reshape(B * S, D)

    # key-pad flags only; causal part is built in-kernel from iota
    pad_flags = (dec_inputs == i_pad).astype(jnp.float32).reshape(B, 1, S)

    scale = 1.0 / math.sqrt(dh)
    attn_probs = []
    for p in params["layers"]:
        # fused Q|K|V projection: one matmul, x2 read from HBM once
        qkv = matmul_bias(x2, p["wqkv_t"], p["bqkv"])                 # [M, 3*H*dh]
        ctx, probs = attention(qkv, pad_flags, B, S, H, dh, scale)
        attn_probs.append(probs)                                      # [B,H,S,S]
        # wo projection fused with bias + residual + LayerNorm1
        y = matmul_res_ln(ctx, p["wo_t"], p["bo"], x2,
                          p["ln1_g"], p["ln1_b"], eps)                # [M, D]
        # FFN (streamed over d_ff) fused with bias + residual + LayerNorm3
        x2 = ffn_res_ln(y, p["w1_t"], p["b1"], p["w2_t"], p["b2"],
                        p["ln3_g"], p["ln3_b"], eps)                  # [M, D]

    # --- tied LM head (bias=False). Drop the last token BEFORE projecting. ---
    xh = x2.reshape(B, S, D)[:, :-1, :].reshape(B * (S - 1), D)
    logits = matmul_bias(xh, params["dec_emb_t"], None, out_dtype=jnp.float32)
    logits = logits[:, :V]                      # drop init-time vocab padding
    return logits.reshape(B, S - 1, V), attn_probs


# ----------------------------------------------------------------------------
# small self-tests / demo
# ----------------------------------------------------------------------------
def _selftest_matmul():
    """Exercises the tiled K-accumulation path, bias add, and dim padding."""
    k1, k2, k3 = jax.random.split(jax.random.PRNGKey(42), 3)
    x = jax.random.normal(k1, (72, 384), jnp.float32).astype(jnp.bfloat16)
    w = jax.random.normal(k2, (384, 256), jnp.float32).astype(jnp.bfloat16)
    b = jax.random.normal(k3, (256,), jnp.float32)
    y = matmul_bias(x, w, b, out_dtype=jnp.float32, tm=32, tn=128, tk=128)
    jax.block_until_ready(y)
    ref = x.astype(jnp.float32) @ w.astype(jnp.float32) + b
    assert y.shape == ref.shape
    assert bool(jnp.allclose(y, ref, atol=2e-2, rtol=2e-2)), \
        float(jnp.max(jnp.abs(y - ref)))


def _run_cfg(cfg, B, seed):
    key = jax.random.PRNGKey(seed)
    pkey, dkey = jax.random.split(key)
    params = init_params(pkey, cfg)
    S = cfg["n_dec_seq"]
    dec_inputs = jax.random.randint(dkey, (B, S), 1, cfg["n_dec_vocab"],
                                    dtype=jnp.int32)
    dec_inputs = dec_inputs.at[1, S - 2:].set(cfg["i_pad"])   # exercise pad mask

    logits_lm, attn_probs = gpt_pretrain_forward(params, dec_inputs, cfg)
    jax.block_until_ready(logits_lm)
    for pbs in attn_probs:
        jax.block_until_ready(pbs)

    assert logits_lm.shape == (B, S - 1, cfg["n_dec_vocab"])
    assert all(pbs.shape == (B, cfg["n_head"], S, S) for pbs in attn_probs)
    assert bool(jnp.all(jnp.isfinite(logits_lm)))
    # softmax rows must sum to ~1
    assert bool(jnp.all(jnp.abs(jnp.sum(attn_probs[0], axis=-1) - 1.0) < 1e-3))


if __name__ == "__main__":
    _selftest_matmul()

    # config 1: tiny shapes, fallback attention path (head dim too small for
    # 128-lane groups), 2 layers.
    cfg1 = dict(
        n_dec_vocab=32, n_dec_seq=8, d_hidn=32, n_head=2, d_head=16,
        d_ff=64, n_layer=2, i_pad=0, layer_norm_epsilon=1e-12, dropout=0.0,
    )
    _run_cfg(cfg1, B=2, seed=0)

    # config 2: exercises the 128-lane head-group attention path, the
    # d_ff-streamed FFN accumulator (F=1024 -> two 512 tiles), and the
    # lane-padded tied LM head.
    cfg2 = dict(
        n_dec_vocab=64, n_dec_seq=16, d_hidn=128, n_head=2, d_head=64,
        d_ff=1024, n_layer=1, i_pad=0, layer_norm_epsilon=1e-12, dropout=0.0,
    )
    _run_cfg(cfg2, B=2, seed=1)

    print("KERNEL_OK")
</pallas_src>

<mosaic_0001>
module attributes {stable_mosaic.version = 11 : i64} {
  func.func @_matmul_bias_kernel(%arg0: i32, %arg1: i32, %arg2: i32, %arg3: memref<32x128xbf16, #tpu.memory_space<vmem>>, %arg4: memref<128x128xbf16, #tpu.memory_space<vmem>>, %arg5: memref<1x128xf32, #tpu.memory_space<vmem>>, %arg6: memref<32x128xf32, #tpu.memory_space<vmem>>, %arg7: memref<32x128xf32, #tpu.memory_space<vmem>>) attributes {dimension_semantics = [#tpu.dimension_semantics<parallel>, #tpu.dimension_semantics<parallel>, #tpu.dimension_semantics<arbitrary>], iteration_bounds = array<i64: 8, 2, 4>, scalar_prefetch = 0 : i64, scratch_operands = 1 : i64, tpu.core_type = #tpu.core_type<tc>, window_params = [{transform_indices = @transform_0, window_bounds = array<i64: 32, 128>}, {transform_indices = @transform_1, window_bounds = array<i64: 128, 128>}, {transform_indices = @transform_2, window_bounds = array<i64: 1, 128>}, {transform_indices = @transform_3, window_bounds = array<i64: 32, 128>}]} {
    %c0_i32 = arith.constant 0 : i32
    %0 = arith.cmpi eq, %arg2, %c0_i32 : i32
    %1 = arith.extui %0 : i1 to i32
    %c0_i32_0 = arith.constant 0 : i32
    %2 = arith.cmpi ne, %1, %c0_i32_0 : i32
    scf.if %2 {
      %cst_9 = arith.constant 0.000000e+00 : f32
      %12 = vector.broadcast %cst_9 : f32 to vector<32x128xf32>
      %c0_10 = arith.constant 0 : index
      %c0_11 = arith.constant 0 : index
      %13 = vector.load %arg7[%c0_10, %c0_11] : memref<32x128xf32, #tpu.memory_space<vmem>>, vector<32x128xf32>
      tpu.vector_store %arg7[%c0_10, %c0_11], %12 {strides = array<i32>} : memref<32x128xf32, #tpu.memory_space<vmem>>, vector<32x128xf32>,
    } else {
    }
    %c0 = arith.constant 0 : index
    %c0_1 = arith.constant 0 : index
    %3 = vector.load %arg7[%c0, %c0_1] : memref<32x128xf32, #tpu.memory_space<vmem>>, vector<32x128xf32>
    %c0_2 = arith.constant 0 : index
    %c0_3 = arith.constant 0 : index
    %4 = vector.load %arg3[%c0_2, %c0_3] : memref<32x128xbf16, #tpu.memory_space<vmem>>, vector<32x128xbf16>
    %c0_4 = arith.constant 0 : index
    %c0_5 = arith.constant 0 : index
    %5 = vector.load %arg4[%c0_4, %c0_5] : memref<128x128xbf16, #tpu.memory_space<vmem>>, vector<128x128xbf16>
    %cst = arith.constant dense<0.000000e+00> : vector<32x128xf32>
    %6 = tpu.matmul %4, %5, %cst {dimension_numbers = #tpu.dot_dimension_numbers<[1], [0], [0], [1], [0, 0, 1, 1], [], []>} : vector<32x128xbf16>, vector<128x128xbf16>, vector<32x128xf32> -> vector<32x128xf32>
    %7 = arith.addf %3, %6 : vector<32x128xf32>
    %c0_6 = arith.constant 0 : index
    %c0_7 = arith.constant 0 : index
    %8 = vector.load %arg7[%c0_6, %c0_7] : memref<32x128xf32, #tpu.memory_space<vmem>>, vector<32x128xf32>
    tpu.vector_store %arg7[%c0_6, %c0_7], %7 {strides = array<i32>} : memref<32x128xf32, #tpu.memory_space<vmem>>, vector<32x128xf32>,
    %c3_i32 = arith.constant 3 : i32
    %9 = arith.cmpi eq, %arg2, %c3_i32 : i32
    %10 = arith.extui %9 : i1 to i32
    %c0_i32_8 = arith.constant 0 : i32
    %11 = arith.cmpi ne, %10, %c0_i32_8 : i32
    scf.if %11 {
      %c0_9 = arith.constant 0 : index
      %c0_10 = arith.constant 0 : index
      %12 = vector.load %arg7[%c0_9, %c0_10] : memref<32x128xf32, #tpu.memory_space<vmem>>, vector<32x128xf32>
      %c0_11 = arith.constant 0 : index
      %c0_12 = arith.constant 0 : index
      %13 = vector.load %arg5[%c0_11, %c0_12] : memref<1x128xf32, #tpu.memory_space<vmem>>, vector<1x128xf32>
      %14 = vector.broadcast %13 : vector<1x128xf32> to vector<32x128xf32>
      %15 = arith.addf %12, %14 : vector<32x128xf32>
      %c0_13 = arith.constant 0 : index
      %c0_14 = arith.constant 0 : index
      %16 = vector.load %arg6[%c0_13, %c0_14] : memref<32x128xf32, #tpu.memory_space<vmem>>, vector<32x128xf32>
      tpu.vector_store %arg6[%c0_13, %c0_14], %15 {strides = array<i32>} : memref<32x128xf32, #tpu.memory_space<vmem>>, vector<32x128xf32>,
    } else {
    }
    return
  }
  func.func @transform_0(%arg0: i32, %arg1: i32, %arg2: i32) -> (i32, i32) {
    %c0_i32 = arith.constant 0 : i32
    return %arg0, %arg2 : i32, i32
  }
  func.func @transform_1(%arg0: i32, %arg1: i32, %arg2: i32) -> (i32, i32) {
    %c0_i32 = arith.constant 0 : i32
    return %arg2, %arg1 : i32, i32
  }
  func.func @transform_2(%arg0: i32, %arg1: i32, %arg2: i32) -> (i32, i32) {
    %c0_i32 = arith.constant 0 : i32
    %c0_i32_0 = arith.constant 0 : i32
    return %c0_i32, %arg1 : i32, i32
  }
  func.func @transform_3(%arg0: i32, %arg1: i32, %arg2: i32) -> (i32, i32) {
    %c0_i32 = arith.constant 0 : i32
    return %arg0, %arg1 : i32, i32
  }
}

</mosaic_0001>

<llo_original>
// kernel: tpu_custom_call.1
$region0: #{tpu_custom_call.1}
  #allocation0 [shape = 'u32[]', space=smem, size = 0x4, offset = 0x4, fixed_abs, tag = 'smem constant byte address 0x4 - core index']
  #allocation1 [shape = 'u32[144,128]{1,0:T(1,128)}', space=vmem, size = 0x12000, scoped, tag = 'internal scratch']
  #allocation2 [shape = 'f32[32,128]{1,0:T(8,128)}', space=vmem, size = 0x4000, scoped, tag = 'scratch operand']
  %s0 = inlined_call_operand.hbm [shape: bf16[256,512], index: 0, kind: input, shape index: {}]
  %s1 = inlined_call_operand.hbm [shape: bf16[512,256], index: 1, kind: input, shape index: {}]
  %s2 = inlined_call_operand.hbm [shape: f32[1,256], index: 2, kind: input, shape index: {}]
  %s3 = inlined_call_operand.hbm [shape: f32[256,256], index: 3, kind: output, shape index: {}]
  %s4 = sld [smem:[#allocation0]]
  $region65: #{tpu_custom_call.1} parent=0
    _
  %s6 = ssub.s32 1, %s4
  %s7 = scalar_select 0, %s6, %s4
  $region1: #{tpu_custom_call.1} parent=0
    #allocation3 [shape = 'u8[16384]{0}', space=vmem, size = 0x4000, scoped, tag = 'input window, operand 0']
    #allocation4 [shape = 's32[2]{0}', space=sflag, size = 0x8, scoped, tag = 'scoped memory for tpu_custom_call.1']
    #allocation5 [shape = 's32[2]{0}', space=sflag, size = 0x8, scoped, tag = 'scoped memory for tpu_custom_call.1']
    #allocation6 [shape = 'u8[65536]{0}', space=vmem, size = 0x10000, scoped, tag = 'input window, operand 1']
    #allocation7 [shape = 's32[2]{0}', space=sflag, size = 0x8, scoped, tag = 'scoped memory for tpu_custom_call.1']
    #allocation8 [shape = 'u8[1024]{0}', space=vmem, size = 0x400, scoped, tag = 'input window, operand 2']
    #allocation9 [shape = 'u8[32768]{0}', space=vmem, size = 0x8000, scoped, tag = 'output window, operand 0']
    %8 = vsyncpa [#allocation4], 0
    %s9 = scalar_lea.sflag [#allocation4], 1
    %10 = vsyncpa %s9, 0
    %11 = vsyncpa [#allocation7], 0
    %s12 = scalar_lea.sflag [#allocation7], 1
    %13 = vsyncpa %s12, 0
    %14 = vsyncpa [#allocation5], 0
    %s15 = scalar_lea.sflag [#allocation5], 1
    %16 = vsyncpa %s15, 0
    loop: start=0, step=1, limit=66
    $region2: #{tpu_custom_call.1} parent=1 // loop_pre_header
      _
    $region3: #{tpu_custom_call.1} parent=1 // loop_header
      %s18 = sphi 0, %s22
      %p19 = scmp.ge.s32.totalorder %s18, 66
      %s25 = sphi 0, %s44
      %s26 = sphi 0, %s40
      %s27 = sphi 0, %s36
      %s28 = sphi 0, %s25
      %s29 = sphi 0, %s26
      %s30 = sphi 0, %s27
      %s31 = sphi 0, %s28
      %s32 = sphi 0, %s29
      %s33 = sphi 0, %s30
      %s49 = sphi 0, %s51
      %s52 = sphi 0, %s49
      %s53 = sphi 0, %s52
      %s69 = sphi 0, %s53
      %s77 = sphi 0, %s79
      %s80 = sphi 0, %s77
      %s81 = sphi 0, %s80
      %s97 = sphi 0, %s81
      %s103 = sphi 0, %s105
      %s106 = sphi 0, %s103
      %s107 = sphi 0, %s106
      %s123 = sphi 0, %s107
      %s131 = sphi 0, %s133
      %s134 = sphi 0, %s131
      %s135 = sphi 0, %s134
      %s151 = sphi 0, %s135
    $region4: #{tpu_custom_call.1} parent=1 // loop_header_branch
      %21 = sbr.rel (%p19) target = $region8
    $region5: #{tpu_custom_call.1} parent=1 // loop_body
      %s23 = ssub.s32 %s18, 1
      %s24 = ssub.s32 %s18, 2
      %s34 = sadd.s32 1, %s27
      %p35 = scmp.ge.s32.totalorder %s34, 4
      %s36 = scalar_select %p35, 0, %s34
      %s37 = sadd.s32 1, %s26
      %s38 = scalar_select %p35, %s37, %s26
      %p39 = scmp.ge.s32.totalorder %s38, 2
      %s40 = scalar_select %p39, 0, %s38
      %s41 = sadd.s32 1, %s25
      %s42 = scalar_select %p39, %s41, %s25
      %p43 = scmp.ge.s32.totalorder %s42, 8
      %s44 = scalar_select %p43, 0, %s42
      %s45 = ssub.s32 %s25, %s44
      %s46 = ssub.s32 %s27, %s36
      %s47 = sor.u32 %s45, %s46
      %p48 = scmp.eq.s32.totalorder %s47, 0
      %s50 = sadd.s32 %s49, 1
      %s51 = scalar_select %p48, %s49, %s50
      %p54 = pneg %p48
      %p55 = scmp.eq.s32.totalorder %s18, 63
      %p56 = por %p54, %p55
      %p57 = scmp.ne.s32.totalorder %s49, %s52
      %p58 = scmp.eq.s32.totalorder %s18, 0
      %p59 = por %p57, %p58
      %p60 = scmp.ne.s32.totalorder %s49, %s52
      %p61 = scmp.eq.s32.totalorder %s23, 63
      %p62 = por %p60, %p61
      %p63 = scmp.ne.s32.totalorder %s52, %s53
      %p64 = scmp.eq.s32.totalorder %s23, 0
      %p65 = por %p63, %p64
      %p66 = scmp.ne.s32.totalorder %s52, %s53
      %p67 = scmp.eq.s32.totalorder %s24, 63
      %p68 = por %p66, %p67
      %p70 = scmp.ne.s32.totalorder %s53, %s69
      %p71 = scmp.eq.s32.totalorder %s24, 0
      %p72 = por %p70, %p71
      %s73 = ssub.s32 %s27, %s36
      %s74 = ssub.s32 %s26, %s40
      %s75 = sor.u32 %s73, %s74
      %p76 = scmp.eq.s32.totalorder %s75, 0
      %s78 = sadd.s32 %s77, 1
      %s79 = scalar_select %p76, %s77, %s78
      %p82 = pneg %p76
      %p83 = scmp.eq.s32.totalorder %s18, 63
      %p84 = por %p82, %p83
      %p85 = scmp.ne.s32.totalorder %s77, %s80
      %p86 = scmp.eq.s32.totalorder %s18, 0
      %p87 = por %p85, %p86
      %p88 = scmp.ne.s32.totalorder %s77, %s80
      %p89 = scmp.eq.s32.totalorder %s23, 63
      %p90 = por %p88, %p89
      %p91 = scmp.ne.s32.totalorder %s80, %s81
      %p92 = scmp.eq.s32.totalorder %s23, 0
      %p93 = por %p91, %p92
      %p94 = scmp.ne.s32.totalorder %s80, %s81
      %p95 = scmp.eq.s32.totalorder %s24, 63
      %p96 = por %p94, %p95
      %p98 = scmp.ne.s32.totalorder %s81, %s97
      %p99 = scmp.eq.s32.totalorder %s24, 0
      %p100 = por %p98, %p99
      %s101 = ssub.s32 %s26, %s40
      %p102 = scmp.eq.s32.totalorder %s101, 0
      %s104 = sadd.s32 %s103, 1
      %s105 = scalar_select %p102, %s103, %s104
      %p108 = pneg %p102
      %p109 = scmp.eq.s32.totalorder %s18, 63
      %p110 = por %p108, %p109
      %p111 = scmp.ne.s32.totalorder %s103, %s106
      %p112 = scmp.eq.s32.totalorder %s18, 0
      %p113 = por %p111, %p112
      %p114 = scmp.ne.s32.totalorder %s103, %s106
      %p115 = scmp.eq.s32.totalorder %s23, 63
      %p116 = por %p114, %p115
      %p117 = scmp.ne.s32.totalorder %s106, %s107
      %p118 = scmp.eq.s32.totalorder %s23, 0
      %p119 = por %p117, %p118
      %p120 = scmp.ne.s32.totalorder %s106, %s107
      %p121 = scmp.eq.s32.totalorder %s24, 63
      %p122 = por %p120, %p121
      %p124 = scmp.ne.s32.totalorder %s107, %s123
      %p125 = scmp.eq.s32.totalorder %s24, 0
      %p126 = por %p124, %p125
      %s127 = ssub.s32 %s25, %s44
      %s128 = ssub.s32 %s26, %s40
      %s129 = sor.u32 %s127, %s128
      %p130 = scmp.eq.s32.totalorder %s129, 0
      %s132 = sadd.s32 %s131, 1
      %s133 = scalar_select %p130, %s131, %s132
      %p136 = pneg %p130
      %p137 = scmp.eq.s32.totalorder %s18, 63
      %p138 = por %p136, %p137
      %p139 = scmp.ne.s32.totalorder %s131, %s134
      %p140 = scmp.eq.s32.totalorder %s18, 0
      %p141 = por %p139, %p140
      %p142 = scmp.ne.s32.totalorder %s131, %s134
      %p143 = scmp.eq.s32.totalorder %s23, 63
      %p144 = por %p142, %p143
      %p145 = scmp.ne.s32.totalorder %s134, %s135
      %p146 = scmp.eq.s32.totalorder %s23, 0
      %p147 = por %p145, %p146
      %p148 = scmp.ne.s32.totalorder %s134, %s135
      %p149 = scmp.eq.s32.totalorder %s24, 63
      %p150 = por %p148, %p149
      %p152 = scmp.ne.s32.totalorder %s135, %s151
      %p153 = scmp.eq.s32.totalorder %s24, 0
      %p154 = por %p152, %p153
      %p155 = scmp.le.s32.totalorder 1, %s18
      %p156 = scmp.lt.s32.totalorder %s18, 65
      %p157 = pnand %p155, %p156
      %p158 = pneg %p157
      // Predicated region
      $region9: #{tpu_custom_call.1} parent=5 // pred_check
        _
      $region10: #{tpu_custom_call.1} parent=5 // pred_check_branch
        %160 = sbr.rel (%p157) target = $region12
      $region11: #{tpu_custom_call.1} parent=5 // pred_region
        %s161 = ssub.s32 %s18, 1
      $region12: #{tpu_custom_call.1} parent=5 // pred_fallthru
        _
      %p162 = scmp.lt.s32.totalorder %s18, 64
      // Predicated region
      $region13: #{tpu_custom_call.1} parent=5 // pred_check
        %p163 = pneg %p162
      $region14: #{tpu_custom_call.1} parent=5 // pred_check_branch
        %165 = sbr.rel (%p163) target = $region16
      $region15: #{tpu_custom_call.1} parent=5 // pred_region
        // Predicated region
        $region17: #{tpu_custom_call.1} parent=15 // pred_check
          %p166 = pneg %p59
        $region18: #{tpu_custom_call.1} parent=15 // pred_check_branch
          %168 = sbr.rel (%p166) target = $region20
        $region19: #{tpu_custom_call.1} parent=15 // pred_region
          %s169 = sand.u32 %s49, 1
          %s170 = scalar_lea.sflag [#allocation4], %s169
          %s171 = sand.u32 %s49, 1
          %s172 = smul.addr %s171, 16
          %s173 = scalar_lea.vmem [#allocation3], %s172
          %s174 = smul.u32 4, %s25
          %s176 = ssub.s32 256, 256
          %177 = vsyncadd %s170, %s176
          %s178 = smul.addr %s174, 4
          %s179 = sadd.s32 %s27, %s178
          %s180 = smul.addr %s179, 64
          %s181 = scalar_lea.hbm %s0, %s180
          %s182 = sshll.u32 %s173, 4
          %s183 = int_to_ptr.vmem [resolvable:$true] %s182
          %188 = dma.hbm_to_vmem [thread:$0]  %s181, 256, %s183, %s170, 256, 64, 4
        $region20: #{tpu_custom_call.1} parent=15 // pred_fallthru
          _
        // Predicated region
        $region21: #{tpu_custom_call.1} parent=15 // pred_check
          %p189 = pneg %p87
        $region22: #{tpu_custom_call.1} parent=15 // pred_check_branch
          %191 = sbr.rel (%p189) target = $region24
        $region23: #{tpu_custom_call.1} parent=15 // pred_region
          %s192 = sand.u32 %s18, 1
          %s193 = scalar_lea.sflag [#allocation7], %s192
          %s194 = sand.u32 %s77, 1
          %s195 = smul.addr %s194, 64
          %s196 = scalar_lea.vmem [#allocation6], %s195
          %s197 = smul.u32 16, %s27
          %s199 = ssub.s32 1024, 1024
          %200 = vsyncadd %s193, %s199
          %s201 = smul.addr %s197, 2
          %s202 = sadd.s32 %s26, %s201
          %s203 = smul.addr %s202, 64
          %s204 = scalar_lea.hbm %s1, %s203
          %s205 = sshll.u32 %s196, 4
          %s206 = int_to_ptr.vmem [resolvable:$true] %s205
          %211 = dma.hbm_to_vmem [thread:$0]  %s204, 1024, %s206, %s193, 128, 64, 4
        $region24: #{tpu_custom_call.1} parent=15 // pred_fallthru
          _
        // Predicated region
        $region25: #{tpu_custom_call.1} parent=15 // pred_check
          %p212 = pneg %p113
        $region26: #{tpu_custom_call.1} parent=15 // pred_check_branch
          %214 = sbr.rel (%p212) target = $region28
        $region27: #{tpu_custom_call.1} parent=15 // pred_region
          %s215 = sand.u32 %s18, 1
          %s216 = scalar_lea.sflag [#allocation7], %s215
          %s217 = sand.u32 %s103, 1
          %s218 = scalar_lea.vmem [#allocation8], %s217
          %s220 = ssub.s32 16, 16
          %221 = vsyncadd %s216, %s220
          %s222 = smul.addr %s26, 16
          %s223 = scalar_lea.hbm %s2, %s222
          %s225 = sshll.u32 %s218, 4
          %s226 = int_to_ptr.vmem [resolvable:$true] %s225
          %228 = dma.hbm_to_vmem [thread:$0]  %s223, 16, %s226, %s216
        $region28: #{tpu_custom_call.1} parent=15 // pred_fallthru
          _
      $region16: #{tpu_custom_call.1} parent=5 // pred_fallthru
        _
      %p229 = scmp.le.s32.totalorder 1, %s18
      %p230 = scmp.lt.s32.totalorder %s18, 65
      %p231 = pnand %p229, %p230
      %p232 = pneg %p231
      // Predicated region
      $region29: #{tpu_custom_call.1} parent=5 // pred_check
        _
      $region30: #{tpu_custom_call.1} parent=5 // pred_check_branch
        %234 = sbr.rel (%p231) target = $region32
      $region31: #{tpu_custom_call.1} parent=5 // pred_region
        %s235 = ssub.s32 %s18, 1
        %s236 = sand.u32 %s52, 1
        %s237 = scalar_lea.sflag [#allocation4], %s236
        %s238 = sand.u32 %s52, 1
        %s239 = smul.addr %s238, 16
        %s240 = scalar_lea.vmem [#allocation3], %s239
        // Predicated region
        $region33: #{tpu_custom_call.1} parent=31 // pred_check
          %p241 = pneg %p65
        $region34: #{tpu_custom_call.1} parent=31 // pred_check_branch
          %243 = sbr.rel (%p241) target = $region36
        $region35: #{tpu_custom_call.1} parent=31 // pred_region
          %244 = dma.done %s237, 256
        $region36: #{tpu_custom_call.1} parent=31 // pred_fallthru
          _
        %s245 = sand.u32 %s23, 1
        %s246 = scalar_lea.sflag [#allocation7], %s245
        %s247 = sand.u32 %s80, 1
        %s248 = smul.addr %s247, 64
        %s249 = scalar_lea.vmem [#allocation6], %s248
        // Predicated region
        $region37: #{tpu_custom_call.1} parent=31 // pred_check
          %p250 = pneg %p93
        $region38: #{tpu_custom_call.1} parent=31 // pred_check_branch
          %252 = sbr.rel (%p250) target = $region40
        $region39: #{tpu_custom_call.1} parent=31 // pred_region
          %253 = dma.done %s246, 1024
        $region40: #{tpu_custom_call.1} parent=31 // pred_fallthru
          _
        %s254 = sand.u32 %s23, 1
        %s255 = scalar_lea.sflag [#allocation7], %s254
        %s256 = sand.u32 %s106, 1
        %s257 = scalar_lea.vmem [#allocation8], %s256
        // Predicated region
        $region41: #{tpu_custom_call.1} parent=31 // pred_check
          %p258 = pneg %p119
        $region42: #{tpu_custom_call.1} parent=31 // pred_check_branch
          %260 = sbr.rel (%p258) target = $region44
        $region43: #{tpu_custom_call.1} parent=31 // pred_region
          %261 = dma.done %s255, 16
        $region44: #{tpu_custom_call.1} parent=31 // pred_fallthru
          _
        %s262 = sand.u32 %s52, 1
        %s263 = scalar_lea.sflag [#allocation4], %s262
        %s264 = sand.u32 %s52, 1
        %s265 = smul.addr %s264, 16
        %s266 = scalar_lea.vmem [#allocation3], %s265
        %p267 = pneg %p65
        %p268 = pneg %p62
        %s269 = sand.u32 %s23, 1
        %s270 = scalar_lea.sflag [#allocation7], %s269
        %s271 = sand.u32 %s80, 1
        %s272 = smul.addr %s271, 64
        %s273 = scalar_lea.vmem [#allocation6], %s272
        %p274 = pneg %p93
        %p275 = pneg %p90
        %s276 = sand.u32 %s23, 1
        %s277 = scalar_lea.sflag [#allocation7], %s276
        %s278 = sand.u32 %s106, 1
        %s279 = scalar_lea.vmem [#allocation8], %s278
        %p280 = pneg %p119
        %p281 = pneg %p116
        %p282 = pneg %p147
        %p283 = pneg %p144
        %s284 = sand.u32 %s134, 1
        %s285 = scalar_lea.sflag [#allocation5], %s284
        %s286 = sand.u32 %s134, 1
        %s287 = smul.addr %s286, 32
        %s288 = scalar_lea.vmem [#allocation9], %s287
        %s289 = smul.u32 4, %s28
        %s290 = smul.u32 16, %s30
        %s291 = smul.u32 4, %s28
        %p293 = scmp.eq.s32.totalorder %s30, 0
        // Predicated region
        $region45: #{tpu_custom_call.1} parent=31 // pred_check
          %p294 = pneg %p293
        $region46: #{tpu_custom_call.1} parent=31 // pred_check_branch
          %296 = sbr.rel (%p294) target = $region48
        $region47: #{tpu_custom_call.1} parent=31 // pred_region
          %297 = vst [vmem:[#allocation2] sm:$0xff] 0.0
          %298 = vst [vmem:[#allocation2 + $0x8] sm:$0xff] 0.0
          %299 = vst [vmem:[#allocation2 + $0x10] sm:$0xff] 0.0
          %300 = vst [vmem:[#allocation2 + $0x18] sm:$0xff] 0.0
        $region48: #{tpu_custom_call.1} parent=31 // pred_fallthru
          _
        %v301 = vld [vmem:[#allocation2] sm:$0xff]
        %v302 = vld [vmem:[#allocation2 + $0x8] sm:$0xff]
        %v303 = vld [vmem:[#allocation2 + $0x10] sm:$0xff]
        %v304 = vld [vmem:[#allocation2 + $0x18] sm:$0xff]
        %v305 = vld [vmem:[%s240] sm:$0xf]
        %v306 = vld [vmem:[%s240 + $0x4] sm:$0xf]
        %v307 = vld [vmem:[%s240 + $0x8] sm:$0xf]
        %v308 = vld [vmem:[%s240 + $0xc] sm:$0xf]
        %v309 = vld [vmem:[%s249] sm:$0xf]
        %v310 = vld [vmem:[%s249 + $0x4] sm:$0xf]
        %v311 = vld [vmem:[%s249 + $0x8] sm:$0xf]
        %v312 = vld [vmem:[%s249 + $0xc] sm:$0xf]
        %v313 = vld [vmem:[%s249 + $0x10] sm:$0xf]
        %v314 = vld [vmem:[%s249 + $0x14] sm:$0xf]
        %v315 = vld [vmem:[%s249 + $0x18] sm:$0xf]
        %v316 = vld [vmem:[%s249 + $0x1c] sm:$0xf]
        %v317 = vld [vmem:[%s249 + $0x20] sm:$0xf]
        %v318 = vld [vmem:[%s249 + $0x24] sm:$0xf]
        %v319 = vld [vmem:[%s249 + $0x28] sm:$0xf]
        %v320 = vld [vmem:[%s249 + $0x2c] sm:$0xf]
        %v321 = vld [vmem:[%s249 + $0x30] sm:$0xf]
        %v322 = vld [vmem:[%s249 + $0x34] sm:$0xf]
        %v323 = vld [vmem:[%s249 + $0x38] sm:$0xf]
        %v324 = vld [vmem:[%s249 + $0x3c] sm:$0xf]
        %v329 = vunpack.c.l.b16 %v305
        %v330 = vunpack.c.l.b16 %v306
        %v331 = vunpack.c.l.b16 %v307
        %v332 = vunpack.c.l.b16 %v308
        %v333 = vpack.c.b16 %v330, %v329
        %v334 = vpack.c.b16 %v332, %v331
        %v353 = vunpack.c.l.b16 %v309
        %v354 = vunpack.c.l.b16 %v310
        %v355 = vunpack.c.l.b16 %v311
        %v356 = vunpack.c.l.b16 %v312
        %v357 = vunpack.c.l.b16 %v313
        %v358 = vunpack.c.l.b16 %v314
        %v359 = vunpack.c.l.b16 %v315
        %v360 = vunpack.c.l.b16 %v316
        %v361 = vunpack.c.l.b16 %v317
        %v362 = vunpack.c.l.b16 %v318
        %v363 = vunpack.c.l.b16 %v319
        %v364 = vunpack.c.l.b16 %v320
        %v365 = vunpack.c.l.b16 %v321
        %v366 = vunpack.c.l.b16 %v322
        %v367 = vunpack.c.l.b16 %v323
        %v368 = vunpack.c.l.b16 %v324
        %v369 = vpack.c.b16 %v354, %v353
        %v370 = vpack.c.b16 %v356, %v355
        %v371 = vpack.c.b16 %v358, %v357
        %v372 = vpack.c.b16 %v360, %v359
        %v373 = vpack.c.b16 %v362, %v361
        %v374 = vpack.c.b16 %v364, %v363
        %v375 = vpack.c.b16 %v366, %v365
        %v376 = vpack.c.b16 %v368, %v367
        %385 = vmatprep.subr.bf16.mxu0 0
        %386 = vmatpush1.bf16.msra.mxu0 %v369
        %387 = vmatprep.subr.bf16.mxu0 0
        %388 = vmatpush1.bf16.msra.mxu0 %v370
        %389 = vmatprep.subr.bf16.mxu0 0
        %390 = vmatpush1.bf16.msra.mxu0 %v371
        %391 = vmatprep.subr.bf16.mxu0 0
        %392 = vmatpush1.bf16.msra.mxu0 %v372
        %393 = vmatprep.subr.bf16.mxu0 0
        %394 = vmatpush1.bf16.msra.mxu0 %v373
        %395 = vmatprep.subr.bf16.mxu0 0
        %396 = vmatpush1.bf16.msra.mxu0 %v374
        %397 = vmatprep.subr.bf16.mxu0 0
        %398 = vmatpush1.bf16.msra.mxu0 %v375
        %399 = vmatprep.subr.bf16.mxu0 0
        %400 = vmatpush1.bf16.msra.mxu0 %v376
        %401 = vmatprep.subr.bf16.mxu0 0
        %402 = vmatpush1.bf16.msra.mxu0 0
        %403 = vmatprep.subr.bf16.mxu0 0
        %404 = vmatpush1.bf16.msra.mxu0 0
        %405 = vmatprep.subr.bf16.mxu0 0
        %406 = vmatpush1.bf16.msra.mxu0 0
        %407 = vmatprep.subr.bf16.mxu0 0
        %408 = vmatpush1.bf16.msra.mxu0 0
        %409 = vmatprep.subr.bf16.mxu0 0
        %410 = vmatpush1.bf16.msra.mxu0 0
        %411 = vmatprep.subr.bf16.mxu0 0
        %412 = vmatpush1.bf16.msra.mxu0 0
        %413 = vmatprep.subr.bf16.mxu0 0
        %414 = vmatpush1.bf16.msra.mxu0 0
        %415 = vmatprep.subr.bf16.mxu0 0
        %416 = vmatpush1.bf16.msra.mxu0 0
        %417 = vmatprep.mubr.bf16.mxu0 0
        %418 = vmatmul.mubr.bf16.gmra.mrb[0].mxu0 %v333
        %v419 = vpop.f32.mrb[0].mxu0
        %v420 = vadd.f32 0.0, %v419
        %v421 = vpop.f32.mrb[0].mxu0
        %v422 = vpop.f32.mrb[0].mxu0
        %v423 = vadd.f32 0.0, %v422
        %v424 = vpop.f32.mrb[0].mxu0
        %425 = vmatprep.mubr.bf16.mxu0 0
        %426 = vmatmul.mubr.bf16.gmra.mrb[0].mxu0 %v334
        %v427 = vpop.f32.mrb[0].mxu0
        %v428 = vadd.f32 0.0, %v427
        %v429 = vpop.f32.mrb[0].mxu0
        %v430 = vpop.f32.mrb[0].mxu0
        %v431 = vadd.f32 0.0, %v430
        %v432 = vpop.f32.mrb[0].mxu0
        %433 = vdwg.mxu0
        %v434 = vadd.f32 %v301, %v420
        %v435 = vadd.f32 %v302, %v423
        %v436 = vadd.f32 %v303, %v428
        %v437 = vadd.f32 %v304, %v431
        %438 = vst [vmem:[#allocation2] sm:$0xff] %v434
        %439 = vst [vmem:[#allocation2 + $0x8] sm:$0xff] %v435
        %440 = vst [vmem:[#allocation2 + $0x10] sm:$0xff] %v436
        %441 = vst [vmem:[#allocation2 + $0x18] sm:$0xff] %v437
        %p442 = scmp.eq.s32.totalorder %s30, 3
        // Predicated region
        $region49: #{tpu_custom_call.1} parent=31 // pred_check
          %p443 = pneg %p442
        $region50: #{tpu_custom_call.1} parent=31 // pred_check_branch
          %445 = sbr.rel (%p443) target = $region52
        $region51: #{tpu_custom_call.1} parent=31 // pred_region
          %v446 = vld [vmem:[#allocation2] sm:$0xff]
          %v447 = vld [vmem:[#allocation2 + $0x8] sm:$0xff]
          %v448 = vld [vmem:[#allocation2 + $0x10] sm:$0xff]
          %v449 = vld [vmem:[#allocation2 + $0x18] sm:$0xff]
          %v450 = vld [vmem:[%s257] sm:$0x1]
          %v452 = vlaneseq
          %v453 = vshrl.u32 %v452, 7
          %v454 = vsub.s32 0, %v453
          %v455 = vrot.slane %v450, %v454
          %v457 = vadd.f32 %v446, %v455
          %v458 = vadd.f32 %v447, %v455
          %v459 = vadd.f32 %v448, %v455
          %v460 = vadd.f32 %v449, %v455
          %461 = vst [vmem:[%s288] sm:$0xff] %v457
          %462 = vst [vmem:[%s288 + $0x8] sm:$0xff] %v458
          %463 = vst [vmem:[%s288 + $0x10] sm:$0xff] %v459
          %464 = vst [vmem:[%s288 + $0x18] sm:$0xff] %v460
        $region52: #{tpu_custom_call.1} parent=31 // pred_fallthru
          _
        %s465 = sand.u32 %s134, 1
        %s466 = scalar_lea.sflag [#allocation5], %s465
        %s467 = sand.u32 %s134, 1
        %s468 = smul.addr %s467, 32
        %s469 = scalar_lea.vmem [#allocation9], %s468
        // Predicated region
        $region53: #{tpu_custom_call.1} parent=31 // pred_check
          %p470 = pneg %p144
        $region54: #{tpu_custom_call.1} parent=31 // pred_check_branch
          %472 = sbr.rel (%p470) target = $region56
        $region55: #{tpu_custom_call.1} parent=31 // pred_region
          %s473 = smul.u32 4, %s28
          %s475 = ssub.s32 512, 512
          %476 = vsyncadd %s466, %s475
          %s477 = smul.addr %s473, 2
          %s478 = sadd.s32 %s29, %s477
          %s479 = smul.addr %s478, 128
          %s480 = scalar_lea.hbm %s3, %s479
          %s481 = sshll.u32 %s469, 4
          %s482 = int_to_ptr.vmem [resolvable:$true] %s481
          %487 = dma.vmem_to_hbm [thread:$0]  %s482, 512, %s480, %s466, 128, 256, 8
        $region56: #{tpu_custom_call.1} parent=31 // pred_fallthru
          _
      $region32: #{tpu_custom_call.1} parent=5 // pred_fallthru
        _
      %p488 = scmp.le.s32.totalorder 2, %s18
      // Predicated region
      $region57: #{tpu_custom_call.1} parent=5 // pred_check
        %p489 = pneg %p488
      $region58: #{tpu_custom_call.1} parent=5 // pred_check_branch
        %491 = sbr.rel (%p489) target = $region60
      $region59: #{tpu_custom_call.1} parent=5 // pred_region
        %s492 = ssub.s32 %s18, 2
        // Predicated region
        $region61: #{tpu_custom_call.1} parent=59 // pred_check
          %p493 = pneg %p150
        $region62: #{tpu_custom_call.1} parent=59 // pred_check_branch
          %495 = sbr.rel (%p493) target = $region64
        $region63: #{tpu_custom_call.1} parent=59 // pred_region
          %s496 = sand.u32 %s135, 1
          %s497 = scalar_lea.sflag [#allocation5], %s496
          %s498 = sand.u32 %s135, 1
          %s499 = smul.addr %s498, 32
          %s500 = scalar_lea.vmem [#allocation9], %s499
          %501 = dma.done %s497, 512
        $region64: #{tpu_custom_call.1} parent=59 // pred_fallthru
          _
      $region60: #{tpu_custom_call.1} parent=5 // pred_fallthru
        _
    $region6: #{tpu_custom_call.1} parent=1 // loop_footer
      %s22 = sadd.s32 1, %s18
    $region7: #{tpu_custom_call.1} parent=1 // loop_footer_branch
      %17 = sbr.rel target = $region3
    $region8: #{tpu_custom_call.1} parent=1 // loop_exit
      _
    %502 = vsyncpa [#allocation4], 1
    %s503 = scalar_lea.sflag [#allocation4], 1
    %504 = vsyncpa %s503, 1
    %505 = vsyncpa [#allocation7], 1
    %s506 = scalar_lea.sflag [#allocation7], 1
    %507 = vsyncpa %s506, 1
    %508 = vsyncpa [#allocation5], 1
    %s509 = scalar_lea.sflag [#allocation5], 1
    %510 = vsyncpa %s509, 1

</llo_original>
